<compile_context>
chip_gen: v7x
topology: tpu7x:2x2x1
jax: 0.10.0
libtpu: 0.0.40
codegen_flags: <defaults>
</compile_context>

<pallas_src>
import functools
import math

import numpy as np
import jax
import jax.numpy as jnp
from jax import lax
from jax.experimental import pallas as pl
from jax.experimental.pallas import tpu as pltpu

_VMEM_LIMIT = 48 * 1024 * 1024  # explicit scoped-VMEM limit (safe on v5e/v6e/v7x)


# ---------------------------------------------------------------------------
# Kernel 1: ProbSparse sparsity measure M, per batch (all heads in one step)
# ---------------------------------------------------------------------------
def _measure_kernel(q_ref, k_ref, cnt_ref, bias_ref, m_ref, *, n_heads, d_head, inv_L_K):
    # q_ref:   (1, L_Q, H*Dh) bf16   lane-dense slab
    # k_ref:   (1, L_K, H*Dh) bf16
    # cnt_ref: (L_K, L_Q)     f32    per-(key,query) sample counts (shared constant)
    # bias_ref:(L_K, L_Q)     f32    additive mask: 0 where sampled, -1e30 otherwise
    # m_ref:   (1, H, L_Q)    f32
    q = q_ref[0]
    k = k_ref[0]
    cnt = cnt_ref[...]
    bias = bias_ref[...]
    rows = []
    for h in range(n_heads):
        qh = q[:, h * d_head:(h + 1) * d_head]
        kh = k[:, h * d_head:(h + 1) * d_head]
        # scores^T = K_h @ Q_h^T -> (L_K, L_Q); queries on the lane axis so the
        # reductions below produce lane-dense (1, L_Q) rows (MXU contraction over Dh).
        st = lax.dot_general(kh, qh, (((1,), (1,)), ((), ())),
                             preferred_element_type=jnp.float32)
        smax = jnp.max(st + bias, axis=0, keepdims=True)       # max over sampled keys
        ssum = jnp.sum(st * cnt, axis=0, keepdims=True)        # duplicate-weighted sum
        rows.append(smax - ssum * inv_L_K)
    m_ref[0] = jnp.concatenate(rows, axis=0)                   # (H, L_Q)


# ---------------------------------------------------------------------------
# Kernel 2: top-u attention + initial context + in-kernel row scatter, per batch
# ---------------------------------------------------------------------------
def _attn_ctx_kernel(q_ref, k_ref, v_ref, ir_ref, ic_ref, *rest,
                     n_heads, d_head, scale, mask_flag):
    if mask_flag:
        tril_ref, ctx_ref = rest
    else:
        (ctx_ref,) = rest
        tril_ref = None

    q = q_ref[0]                                   # (L_Q, H*Dh) bf16
    k = k_ref[0]                                   # (L_K, H*Dh) bf16
    v = v_ref[0]                                   # (L_K, H*Dh) bf16
    L_Q = q.shape[0]
    L_K = k.shape[0]
    dm = q.shape[1]
    u = ir_ref.shape[2]

    # initial context for all heads at once (lane-dense, one MXU call / one mean)
    if mask_flag:
        ctx0 = jnp.dot(tril_ref[...], v, preferred_element_type=jnp.float32)  # cumsum(V)
    else:
        vmean = jnp.mean(v.astype(jnp.float32), axis=0, keepdims=True)
        ctx0 = jnp.broadcast_to(vmean, (L_Q, dm))

    cols = []
    for h in range(n_heads):
        lo, hi = h * d_head, (h + 1) * d_head
        qh, kh, vh = q[:, lo:hi], k[:, lo:hi], v[:, lo:hi]
        ir = ir_ref[0, h]                          # (u, 1) int32
        ic = ic_ref[0, h]                          # (1, u) int32

        # gather the top-u query rows with an exact one-hot matmul (MXU, no HBM gather)
        sel = (lax.broadcasted_iota(jnp.int32, (u, L_Q), 1) == ir).astype(jnp.bfloat16)
        qr = jnp.dot(sel, qh, preferred_element_type=jnp.float32)        # (u, Dh)

        # scores for the selected queries
        s = lax.dot_general(qr.astype(jnp.bfloat16), kh, (((1,), (1,)), ((), ())),
                            preferred_element_type=jnp.float32) * scale  # (u, L_K)
        if mask_flag:
            kpos = lax.broadcasted_iota(jnp.int32, (u, L_K), 1)
            s = jnp.where(kpos > ir, -jnp.inf, s)                        # ProbMask

        # softmax: f32 elementwise on the VPU, reciprocal on the EUP
        smax = jnp.max(s, axis=-1, keepdims=True)
        p = jnp.exp(s - smax)
        attn = p * pl.reciprocal(jnp.sum(p, axis=-1, keepdims=True), approx=True)

        upd = jnp.dot(attn.astype(jnp.bfloat16), vh,
                      preferred_element_type=jnp.float32)                # (u, Dh)

        # scatter the attended rows into the context (bf16 one-hot matmul on the MXU)
        onehot = (lax.broadcasted_iota(jnp.int32, (L_Q, u), 0) == ic).astype(jnp.bfloat16)
        selected = jnp.sum(onehot.astype(jnp.float32), axis=-1, keepdims=True)  # {0,1}
        scat = jnp.dot(onehot, upd.astype(jnp.bfloat16),
                       preferred_element_type=jnp.float32)               # (L_Q, Dh)
        cols.append(ctx0[:, lo:hi] * (1.0 - selected) + scat)

    ctx_ref[0] = jnp.concatenate(cols, axis=-1).astype(ctx_ref.dtype)    # lane-dense store


# ---------------------------------------------------------------------------
# Kernel 3: fused residual + LayerNorm1 + (1x1 conv) FFN + residual + LayerNorm2
# ---------------------------------------------------------------------------
def _ffn_norm_kernel(x_ref, nx_ref, w1_ref, b1_ref, w2_ref, b2_ref,
                     g1_ref, be1_ref, g2_ref, be2_ref, o_ref, *, eps):
    xr = x_ref[...].astype(jnp.float32) + nx_ref[...].astype(jnp.float32)

    mu = jnp.mean(xr, axis=-1, keepdims=True)
    xc = xr - mu
    var = jnp.mean(xc * xc, axis=-1, keepdims=True)
    h = xc * lax.rsqrt(var + eps)
    h = h * g1_ref[...].astype(jnp.float32) + be1_ref[...].astype(jnp.float32)

    y = jnp.dot(h.astype(jnp.bfloat16), w1_ref[...],
                preferred_element_type=jnp.float32) + b1_ref[...].astype(jnp.float32)
    y = jnp.maximum(y, 0.0)                            # ReLU (activation='relu')
    y = jnp.dot(y.astype(jnp.bfloat16), w2_ref[...],
                preferred_element_type=jnp.float32) + b2_ref[...].astype(jnp.float32)

    z = h + y
    mu2 = jnp.mean(z, axis=-1, keepdims=True)
    zc = z - mu2
    var2 = jnp.mean(zc * zc, axis=-1, keepdims=True)
    out = zc * lax.rsqrt(var2 + eps)
    out = out * g2_ref[...].astype(jnp.float32) + be2_ref[...].astype(jnp.float32)
    o_ref[...] = out.astype(o_ref.dtype)


# ---------------------------------------------------------------------------
# ProbSparse attention wrappers
# ---------------------------------------------------------------------------
def _prob_dims(L_Q, L_K, factor):
    U_part = min(int(factor * int(np.ceil(np.log(L_K)))), L_K)   # sample_k
    u = min(int(factor * int(np.ceil(np.log(L_Q)))), L_Q)        # n_top
    return U_part, u


def _prob_attention_core(Q, K, V, *, n_heads, factor, scale, mask_flag, sample_key,
                         out_dtype):
    """ProbSparse attention on [B, L, H*Dh] bf16 operands -> context [B, L_Q, H*Dh]."""
    B, L_Q, dm = Q.shape
    L_K = K.shape[1]
    H = n_heads
    Dh = dm // H
    U_part, u = _prob_dims(L_Q, L_K, factor)
    sc = float(scale) if scale is not None else 1.0 / math.sqrt(Dh)

    if sample_key is None:
        sample_key = jax.random.PRNGKey(42)
    # torch.randint(L_K, (L_Q, sample_k)) equivalent (shared across batch & heads)
    index_sample = jax.random.randint(sample_key, (L_Q, U_part), 0, L_K, dtype=jnp.int32)
    # per-(key, query) sample-count matrix + additive mask (hoisted constants)
    cnt = jax.nn.one_hot(index_sample, L_K, dtype=jnp.float32).sum(axis=1).T   # (L_K, L_Q)
    bias = jnp.where(cnt > 0.0, 0.0, -1e30).astype(jnp.float32)

    cp = pltpu.CompilerParams(dimension_semantics=("parallel",),
                              vmem_limit_bytes=_VMEM_LIMIT)

    # ---- stage 1: sparsity measure M (all heads per grid step) ----
    M = pl.pallas_call(
        functools.partial(_measure_kernel, n_heads=H, d_head=Dh, inv_L_K=1.0 / L_K),
        grid=(B,),
        in_specs=[
            pl.BlockSpec((1, L_Q, dm), lambda b: (b, 0, 0)),
            pl.BlockSpec((1, L_K, dm), lambda b: (b, 0, 0)),
            pl.BlockSpec((L_K, L_Q), lambda b: (0, 0)),
            pl.BlockSpec((L_K, L_Q), lambda b: (0, 0)),
        ],
        out_specs=pl.BlockSpec((1, H, L_Q), lambda b: (b, 0, 0)),
        out_shape=jax.ShapeDtypeStruct((B, H, L_Q), jnp.float32),
        compiler_params=cp,
    )(Q, K, cnt, bias)

    # top-u "active" queries (index plumbing stays in plain JAX)
    _, index = jax.lax.top_k(M, u)                     # (B, H, u)
    idx_row = index[..., :, None].astype(jnp.int32)    # (B, H, u, 1)
    idx_col = index[..., None, :].astype(jnp.int32)    # (B, H, 1, u)

    in_specs = [
        pl.BlockSpec((1, L_Q, dm), lambda b: (b, 0, 0)),
        pl.BlockSpec((1, L_K, dm), lambda b: (b, 0, 0)),
        pl.BlockSpec((1, L_K, dm), lambda b: (b, 0, 0)),
        pl.BlockSpec((1, H, u, 1), lambda b: (b, 0, 0, 0)),
        pl.BlockSpec((1, H, 1, u), lambda b: (b, 0, 0, 0)),
    ]
    args = [Q, K, V, idx_row, idx_col]
    if mask_flag:
        if L_Q != L_K:
            raise ValueError("mask_flag=True requires L_Q == L_K")
        tril = jnp.tril(jnp.ones((L_K, L_K), jnp.bfloat16))   # hoisted constant
        in_specs.append(pl.BlockSpec((L_K, L_K), lambda b: (0, 0)))
        args.append(tril)

    # ---- stage 2: attention + initial context + in-kernel scatter ----
    ctx = pl.pallas_call(
        functools.partial(_attn_ctx_kernel, n_heads=H, d_head=Dh, scale=sc,
                          mask_flag=mask_flag),
        grid=(B,),
        in_specs=in_specs,
        out_specs=pl.BlockSpec((1, L_Q, dm), lambda b: (b, 0, 0)),
        out_shape=jax.ShapeDtypeStruct((B, L_Q, dm), out_dtype),
        compiler_params=cp,
    )(*args)
    return ctx


def prob_attention(queries, keys, values, *, factor=5, scale=None,
                   mask_flag=True, sample_key=None):
    """ProbAttention.forward (output_attention=False). Inputs are [B, L, H, D]."""
    B, L, H, Dh = queries.shape
    Q = queries.reshape(B, L, H * Dh).astype(jnp.bfloat16)
    K = keys.reshape(B, keys.shape[1], H * Dh).astype(jnp.bfloat16)
    V = values.reshape(B, values.shape[1], H * Dh).astype(jnp.bfloat16)
    ctx = _prob_attention_core(Q, K, V, n_heads=H, factor=factor, scale=scale,
                               mask_flag=mask_flag, sample_key=sample_key,
                               out_dtype=jnp.float32)
    ctx = ctx.reshape(B, L, H, Dh).transpose(0, 2, 1, 3)   # [B, H, L_Q, Dh]
    # TODO(synk): output_attention=True path (dense attention-map writeback) not implemented.
    return ctx, None


# ---- pure-JAX reference (faithful torch-style gather formulation) ----
def _prob_attention_core_ref(Q, K, V, *, factor, scale, mask_flag, sample_key, out_dtype):
    # Q, K, V: [B, H, L, D] bf16
    B, H, L_Q, D = Q.shape
    L_K = K.shape[2]
    U_part, u = _prob_dims(L_Q, L_K, factor)
    sc = float(scale) if scale is not None else 1.0 / math.sqrt(D)
    if sample_key is None:
        sample_key = jax.random.PRNGKey(42)
    index_sample = jax.random.randint(sample_key, (L_Q, U_part), 0, L_K, dtype=jnp.int32)
    K_sample = K[:, :, index_sample, :]                       # (B, H, L_Q, U_part, D)
    qk = jnp.einsum('bhqe,bhqse->bhqs', Q, K_sample,
                    preferred_element_type=jnp.float32)
    M = qk.max(-1) - qk.sum(-1) / L_K
    _, index = jax.lax.top_k(M, u)
    Qr = jnp.take_along_axis(Q, index[..., None], axis=2)
    s = jnp.einsum('bhue,bhke->bhuk', Qr, K,
                   preferred_element_type=jnp.float32) * sc
    if mask_flag:
        kpos = jnp.arange(L_K)[None, None, None, :]
        s = jnp.where(kpos > index[..., None], -jnp.inf, s)
    attn = jax.nn.softmax(s, axis=-1).astype(jnp.bfloat16)
    upd = jnp.einsum('bhuk,bhkd->bhud', attn, V,
                     preferred_element_type=jnp.float32)
    Vf = V.astype(jnp.float32)
    if mask_flag:
        ctx = jnp.cumsum(Vf, axis=2)
    else:
        ctx = jnp.broadcast_to(Vf.mean(axis=2, keepdims=True), (B, H, L_Q, D))
    bI = jnp.arange(B)[:, None, None]
    hI = jnp.arange(H)[None, :, None]
    ctx = ctx.at[bI, hI, index].set(upd)
    return ctx.astype(out_dtype)


def prob_attention_ref(queries, keys, values, *, factor=5, scale=None,
                       mask_flag=True, sample_key=None):
    Q = jnp.transpose(queries, (0, 2, 1, 3)).astype(jnp.bfloat16)
    K = jnp.transpose(keys, (0, 2, 1, 3)).astype(jnp.bfloat16)
    V = jnp.transpose(values, (0, 2, 1, 3)).astype(jnp.bfloat16)
    return _prob_attention_core_ref(Q, K, V, factor=factor, scale=scale,
                                    mask_flag=mask_flag, sample_key=sample_key,
                                    out_dtype=jnp.float32), None


# ---------------------------------------------------------------------------
# EncoderLayer = AttentionLayer(ProbAttention) + conv1/conv2 FFN + LayerNorms
# ---------------------------------------------------------------------------
def init_encoder_params(key, d_model, d_ff=None):
    d_ff = d_ff or 4 * d_model
    ks = jax.random.split(key, 12)
    s_in = 1.0 / math.sqrt(d_model)
    s_ff = 1.0 / math.sqrt(d_ff)
    f32 = jnp.float32
    return {
        'Wq': jax.random.normal(ks[0], (d_model, d_model), f32) * s_in,
        'bq': jax.random.normal(ks[1], (d_model,), f32) * 0.02,
        'Wk': jax.random.normal(ks[2], (d_model, d_model), f32) * s_in,
        'bk': jax.random.normal(ks[3], (d_model,), f32) * 0.02,
        'Wv': jax.random.normal(ks[4], (d_model, d_model), f32) * s_in,
        'bv': jax.random.normal(ks[5], (d_model,), f32) * 0.02,
        'Wo': jax.random.normal(ks[6], (d_model, d_model), f32) * s_in,
        'bo': jax.random.normal(ks[7], (d_model,), f32) * 0.02,
        'W1': jax.random.normal(ks[8], (d_model, d_ff), f32) * s_in,   # conv1 (k=1)
        'b1': jax.random.normal(ks[9], (d_ff,), f32) * 0.02,
        'W2': jax.random.normal(ks[10], (d_ff, d_model), f32) * s_ff,  # conv2 (k=1)
        'b2': jax.random.normal(ks[11], (d_model,), f32) * 0.02,
        'g1': jnp.ones((d_model,), f32), 'be1': jnp.zeros((d_model,), f32),
        'g2': jnp.ones((d_model,), f32), 'be2': jnp.zeros((d_model,), f32),
    }


def _qkv_project(x, params):
    # Plain dense projections emitted directly in the lane-dense [B, L, d_model] layout
    # consumed by the attention kernels (no [B,L,H,D] -> [B,H,L,D] transpose in HBM).
    xb = x.astype(jnp.bfloat16)

    def proj(w, b):
        y = jnp.einsum('bld,de->ble', xb, w.astype(jnp.bfloat16),
                       preferred_element_type=jnp.float32)
        return (y + b[None, None, :]).astype(jnp.bfloat16)

    return (proj(params['Wq'], params['bq']),
            proj(params['Wk'], params['bk']),
            proj(params['Wv'], params['bv']))


def _out_project(ctx_flat, params):
    # ctx_flat: [B, L, d_model] straight from the attention kernel (no transpose pass)
    y = jnp.einsum('blf,fd->bld', ctx_flat.astype(jnp.bfloat16),
                   params['Wo'].astype(jnp.bfloat16),
                   preferred_element_type=jnp.float32)
    return (y + params['bo'][None, None, :]).astype(jnp.bfloat16)


def _pick_row_block(n):
    for c in (512, 256, 128, 64, 32, 16, 8):
        if n >= c:
            return c
    return 8


def _ffn_norm_call(x2d, nx2d, params, *, eps):
    BL, d_model = x2d.shape
    d_ff = params['W1'].shape[1]
    tl = _pick_row_block(BL)
    pad = (-BL) % tl
    if pad:
        x2d = jnp.pad(x2d, ((0, pad), (0, 0)))
        nx2d = jnp.pad(nx2d, ((0, pad), (0, 0)))
    BLp = BL + pad

    w1 = params['W1'].astype(jnp.bfloat16)
    w2 = params['W2'].astype(jnp.bfloat16)
    b1 = params['b1'].reshape(1, d_ff)
    b2 = params['b2'].reshape(1, d_model)
    g1 = params['g1'].reshape(1, d_model)
    be1 = params['be1'].reshape(1, d_model)
    g2 = params['g2'].reshape(1, d_model)
    be2 = params['be2'].reshape(1, d_model)

    row_spec = pl.BlockSpec((tl, d_model), lambda i: (i, 0))
    const = lambda shape: pl.BlockSpec(shape, lambda i: (0, 0))

    out = pl.pallas_call(
        functools.partial(_ffn_norm_kernel, eps=eps),
        grid=(BLp // tl,),
        in_specs=[
            row_spec, row_spec,
            const((d_model, d_ff)), const((1, d_ff)),
            const((d_ff, d_model)), const((1, d_model)),
            const((1, d_model)), const((1, d_model)),
            const((1, d_model)), const((1, d_model)),
        ],
        out_specs=row_spec,
        out_shape=jax.ShapeDtypeStruct((BLp, d_model), jnp.float32),
        compiler_params=pltpu.CompilerParams(dimension_semantics=("parallel",),
                                             vmem_limit_bytes=_VMEM_LIMIT),
    )(x2d, nx2d, w1, b1, w2, b2, g1, be1, g2, be2)
    return out[:BL] if pad else out


def encoder_layer(x, params, *, n_heads, factor=5, mask_flag=False,
                  sample_key=None, eps=1e-5):
    """EncoderLayer.forward with attention = AttentionLayer(ProbAttention(mask_flag)).
    Dropout layers are eval-mode identities.  Returns (out [B, L, d_model], None)."""
    B, L, d_model = x.shape
    Q, K, V = _qkv_project(x, params)
    ctx = _prob_attention_core(Q, K, V, n_heads=n_heads, factor=factor, scale=None,
                               mask_flag=mask_flag, sample_key=sample_key,
                               out_dtype=jnp.bfloat16)          # [B, L, d_model]
    new_x = _out_project(ctx, params)                           # [B, L, d_model] bf16

    x2d = x.reshape(B * L, d_model).astype(jnp.float32)
    nx2d = new_x.reshape(B * L, d_model)
    out2d = _ffn_norm_call(x2d, nx2d, params, eps=eps)
    # TODO(synk): nn.Dropout is treated as the eval-mode identity (no in-kernel RNG dropout).
    return out2d.reshape(B, L, d_model), None


def encoder_layer_ref(x, params, *, n_heads, factor=5, mask_flag=False,
                      sample_key=None, eps=1e-5):
    """Pure-JAX mirror of the EncoderLayer forward (same dtype strategy)."""
    B, L, d_model = x.shape
    Dh = d_model // n_heads
    Q, K, V = _qkv_project(x, params)
    Qh = Q.reshape(B, L, n_heads, Dh).transpose(0, 2, 1, 3)
    Kh = K.reshape(B, L, n_heads, Dh).transpose(0, 2, 1, 3)
    Vh = V.reshape(B, L, n_heads, Dh).transpose(0, 2, 1, 3)
    ctx = _prob_attention_core_ref(Qh, Kh, Vh, factor=factor, scale=None,
                                   mask_flag=mask_flag, sample_key=sample_key,
                                   out_dtype=jnp.bfloat16)
    ctx_flat = ctx.transpose(0, 2, 1, 3).reshape(B, L, d_model)
    new_x = _out_project(ctx_flat, params)

    x2d = x.reshape(B * L, d_model).astype(jnp.float32)
    nx2d = new_x.reshape(B * L, d_model).astype(jnp.float32)
    w1 = params['W1'].astype(jnp.bfloat16)
    w2 = params['W2'].astype(jnp.bfloat16)

    h0 = x2d + nx2d
    mu = h0.mean(-1, keepdims=True)
    xc = h0 - mu
    var = (xc * xc).mean(-1, keepdims=True)
    h = xc * jax.lax.rsqrt(var + eps) * params['g1'][None, :] + params['be1'][None, :]

    y = jnp.dot(h.astype(jnp.bfloat16), w1,
                preferred_element_type=jnp.float32) + params['b1'][None, :]
    y = jnp.maximum(y, 0.0)
    y = jnp.dot(y.astype(jnp.bfloat16), w2,
                preferred_element_type=jnp.float32) + params['b2'][None, :]

    z = h + y
    mu2 = z.mean(-1, keepdims=True)
    zc = z - mu2
    var2 = (zc * zc).mean(-1, keepdims=True)
    out = zc * jax.lax.rsqrt(var2 + eps) * params['g2'][None, :] + params['be2'][None, :]
    return out.reshape(B, L, d_model), None


if __name__ == "__main__":
    root = jax.random.PRNGKey(0)
    k_x, k_p, k_s1, k_q, k_k, k_v, k_s2 = jax.random.split(root, 7)

    # ---- Test 1: full EncoderLayer (ProbSparse self-attention, encoder => no causal mask) ----
    B, L, H, Dh = 2, 16, 4, 32
    d_model = H * Dh                                   # 128
    x = jax.random.normal(k_x, (B, L, d_model), jnp.float32)
    params = init_encoder_params(k_p, d_model)

    out, attn = encoder_layer(x, params, n_heads=H, factor=5,
                              mask_flag=False, sample_key=k_s1)
    out = jax.block_until_ready(out)
    assert out.shape == (B, L, d_model) and attn is None

    ref, _ = encoder_layer_ref(x, params, n_heads=H, factor=5,
                               mask_flag=False, sample_key=k_s1)
    ref = jax.block_until_ready(ref)
    err1 = float(jnp.max(jnp.abs(out - ref)))
    assert np.isfinite(err1) and err1 < 5e-2, f"encoder max_err={err1}"

    # ---- Test 2: standalone ProbAttention with the causal ProbMask path ----
    q = jax.random.normal(k_q, (B, L, H, Dh), jnp.float32)
    k_ = jax.random.normal(k_k, (B, L, H, Dh), jnp.float32)
    v = jax.random.normal(k_v, (B, L, H, Dh), jnp.float32)
    ctx, a = prob_attention(q, k_, v, factor=5, mask_flag=True, sample_key=k_s2)
    ctx = jax.block_until_ready(ctx)
    assert ctx.shape == (B, H, L, Dh) and a is None

    ctx_ref, _ = prob_attention_ref(q, k_, v, factor=5, mask_flag=True,
                                    sample_key=k_s2)
    ctx_ref = jax.block_until_ready(ctx_ref)
    err2 = float(jnp.max(jnp.abs(ctx - ctx_ref)))
    assert np.isfinite(err2) and err2 < 5e-2, f"prob_attention max_err={err2}"

    print("KERNEL_OK")
</pallas_src>

<mosaic_0001>
module attributes {stable_mosaic.version = 11 : i64} {
  func.func @_measure_kernel(%arg0: i32, %arg1: memref<1x16x128xbf16, #tpu.memory_space<vmem>>, %arg2: memref<1x16x128xbf16, #tpu.memory_space<vmem>>, %arg3: memref<16x16xf32, #tpu.memory_space<vmem>>, %arg4: memref<16x16xf32, #tpu.memory_space<vmem>>, %arg5: memref<1x4x16xf32, #tpu.memory_space<vmem>>) attributes {dimension_semantics = [#tpu.dimension_semantics<parallel>], iteration_bounds = array<i64: 2>, scalar_prefetch = 0 : i64, scratch_operands = 0 : i64, tpu.core_type = #tpu.core_type<tc>, window_params = [{transform_indices = @transform_0, window_bounds = array<i64: 1, 16, 128>}, {transform_indices = @transform_1, window_bounds = array<i64: 1, 16, 128>}, {pipeline_mode = #tpu.pipeline_mode<synchronous>, transform_indices = @transform_2, window_bounds = array<i64: 16, 16>}, {pipeline_mode = #tpu.pipeline_mode<synchronous>, transform_indices = @transform_3, window_bounds = array<i64: 16, 16>}, {transform_indices = @transform_4, window_bounds = array<i64: 1, 4, 16>}]} {
    %c0 = arith.constant 0 : index
    %c0_0 = arith.constant 0 : index
    %c0_1 = arith.constant 0 : index
    %0 = vector.load %arg1[%c0, %c0_0, %c0_1] : memref<1x16x128xbf16, #tpu.memory_space<vmem>>, vector<1x16x128xbf16>
    %1 = vector.shape_cast %0 : vector<1x16x128xbf16> to vector<16x128xbf16>
    %c0_2 = arith.constant 0 : index
    %c0_3 = arith.constant 0 : index
    %c0_4 = arith.constant 0 : index
    %2 = vector.load %arg2[%c0_2, %c0_3, %c0_4] : memref<1x16x128xbf16, #tpu.memory_space<vmem>>, vector<1x16x128xbf16>
    %3 = vector.shape_cast %2 : vector<1x16x128xbf16> to vector<16x128xbf16>
    %c0_5 = arith.constant 0 : index
    %c0_6 = arith.constant 0 : index
    %4 = vector.load %arg3[%c0_5, %c0_6] : memref<16x16xf32, #tpu.memory_space<vmem>>, vector<16x16xf32>
    %c0_7 = arith.constant 0 : index
    %c0_8 = arith.constant 0 : index
    %5 = vector.load %arg4[%c0_7, %c0_8] : memref<16x16xf32, #tpu.memory_space<vmem>>, vector<16x16xf32>
    %6 = vector.extract_strided_slice %1 {offsets = [0, 0], sizes = [16, 32], strides = [1, 1]} : vector<16x128xbf16> to vector<16x32xbf16>
    %7 = vector.extract_strided_slice %3 {offsets = [0, 0], sizes = [16, 32], strides = [1, 1]} : vector<16x128xbf16> to vector<16x32xbf16>
    %cst = arith.constant dense<0.000000e+00> : vector<16x16xf32>
    %8 = tpu.matmul %7, %6, %cst {dimension_numbers = #tpu.dot_dimension_numbers<[1], [1], [0], [0], [0, 0, 1, 0], [], []>} : vector<16x32xbf16>, vector<16x32xbf16>, vector<16x16xf32> -> vector<16x16xf32>
    %9 = arith.addf %8, %5 : vector<16x16xf32>
    %cst_9 = arith.constant dense<0xFF800000> : vector<16xf32>
    %10 = vector.multi_reduction <maximumf>, %9, %cst_9 [0] : vector<16x16xf32> to vector<16xf32>
    %11 = vector.shape_cast %10 : vector<16xf32> to vector<1x16xf32>
    %12 = arith.mulf %8, %4 : vector<16x16xf32>
    %cst_10 = arith.constant dense<0.000000e+00> : vector<16xf32>
    %13 = vector.multi_reduction <add>, %12, %cst_10 [0] : vector<16x16xf32> to vector<16xf32>
    %14 = vector.shape_cast %13 : vector<16xf32> to vector<1x16xf32>
    %cst_11 = arith.constant 6.250000e-02 : f32
    %15 = vector.broadcast %cst_11 : f32 to vector<1x16xf32>
    %16 = arith.mulf %14, %15 : vector<1x16xf32>
    %17 = arith.subf %11, %16 : vector<1x16xf32>
    %18 = vector.extract_strided_slice %1 {offsets = [0, 32], sizes = [16, 32], strides = [1, 1]} : vector<16x128xbf16> to vector<16x32xbf16>
    %19 = vector.extract_strided_slice %3 {offsets = [0, 32], sizes = [16, 32], strides = [1, 1]} : vector<16x128xbf16> to vector<16x32xbf16>
    %cst_12 = arith.constant dense<0.000000e+00> : vector<16x16xf32>
    %20 = tpu.matmul %19, %18, %cst_12 {dimension_numbers = #tpu.dot_dimension_numbers<[1], [1], [0], [0], [0, 0, 1, 0], [], []>} : vector<16x32xbf16>, vector<16x32xbf16>, vector<16x16xf32> -> vector<16x16xf32>
    %21 = arith.addf %20, %5 : vector<16x16xf32>
    %cst_13 = arith.constant dense<0xFF800000> : vector<16xf32>
    %22 = vector.multi_reduction <maximumf>, %21, %cst_13 [0] : vector<16x16xf32> to vector<16xf32>
    %23 = vector.shape_cast %22 : vector<16xf32> to vector<1x16xf32>
    %24 = arith.mulf %20, %4 : vector<16x16xf32>
    %cst_14 = arith.constant dense<0.000000e+00> : vector<16xf32>
    %25 = vector.multi_reduction <add>, %24, %cst_14 [0] : vector<16x16xf32> to vector<16xf32>
    %26 = vector.shape_cast %25 : vector<16xf32> to vector<1x16xf32>
    %cst_15 = arith.constant 6.250000e-02 : f32
    %27 = vector.broadcast %cst_15 : f32 to vector<1x16xf32>
    %28 = arith.mulf %26, %27 : vector<1x16xf32>
    %29 = arith.subf %23, %28 : vector<1x16xf32>
    %30 = vector.extract_strided_slice %1 {offsets = [0, 64], sizes = [16, 32], strides = [1, 1]} : vector<16x128xbf16> to vector<16x32xbf16>
    %31 = vector.extract_strided_slice %3 {offsets = [0, 64], sizes = [16, 32], strides = [1, 1]} : vector<16x128xbf16> to vector<16x32xbf16>
    %cst_16 = arith.constant dense<0.000000e+00> : vector<16x16xf32>
    %32 = tpu.matmul %31, %30, %cst_16 {dimension_numbers = #tpu.dot_dimension_numbers<[1], [1], [0], [0], [0, 0, 1, 0], [], []>} : vector<16x32xbf16>, vector<16x32xbf16>, vector<16x16xf32> -> vector<16x16xf32>
    %33 = arith.addf %32, %5 : vector<16x16xf32>
    %cst_17 = arith.constant dense<0xFF800000> : vector<16xf32>
    %34 = vector.multi_reduction <maximumf>, %33, %cst_17 [0] : vector<16x16xf32> to vector<16xf32>
    %35 = vector.shape_cast %34 : vector<16xf32> to vector<1x16xf32>
    %36 = arith.mulf %32, %4 : vector<16x16xf32>
    %cst_18 = arith.constant dense<0.000000e+00> : vector<16xf32>
    %37 = vector.multi_reduction <add>, %36, %cst_18 [0] : vector<16x16xf32> to vector<16xf32>
    %38 = vector.shape_cast %37 : vector<16xf32> to vector<1x16xf32>
    %cst_19 = arith.constant 6.250000e-02 : f32
    %39 = vector.broadcast %cst_19 : f32 to vector<1x16xf32>
    %40 = arith.mulf %38, %39 : vector<1x16xf32>
    %41 = arith.subf %35, %40 : vector<1x16xf32>
    %42 = vector.extract_strided_slice %1 {offsets = [0, 96], sizes = [16, 32], strides = [1, 1]} : vector<16x128xbf16> to vector<16x32xbf16>
    %43 = vector.extract_strided_slice %3 {offsets = [0, 96], sizes = [16, 32], strides = [1, 1]} : vector<16x128xbf16> to vector<16x32xbf16>
    %cst_20 = arith.constant dense<0.000000e+00> : vector<16x16xf32>
    %44 = tpu.matmul %43, %42, %cst_20 {dimension_numbers = #tpu.dot_dimension_numbers<[1], [1], [0], [0], [0, 0, 1, 0], [], []>} : vector<16x32xbf16>, vector<16x32xbf16>, vector<16x16xf32> -> vector<16x16xf32>
    %45 = arith.addf %44, %5 : vector<16x16xf32>
    %cst_21 = arith.constant dense<0xFF800000> : vector<16xf32>
    %46 = vector.multi_reduction <maximumf>, %45, %cst_21 [0] : vector<16x16xf32> to vector<16xf32>
    %47 = vector.shape_cast %46 : vector<16xf32> to vector<1x16xf32>
    %48 = arith.mulf %44, %4 : vector<16x16xf32>
    %cst_22 = arith.constant dense<0.000000e+00> : vector<16xf32>
    %49 = vector.multi_reduction <add>, %48, %cst_22 [0] : vector<16x16xf32> to vector<16xf32>
    %50 = vector.shape_cast %49 : vector<16xf32> to vector<1x16xf32>
    %cst_23 = arith.constant 6.250000e-02 : f32
    %51 = vector.broadcast %cst_23 : f32 to vector<1x16xf32>
    %52 = arith.mulf %50, %51 : vector<1x16xf32>
    %53 = arith.subf %47, %52 : vector<1x16xf32>
    %54 = tpu.concatenate %17, %29, %41, %53 in 0 : vector<1x16xf32>, vector<1x16xf32>, vector<1x16xf32>, vector<1x16xf32> -> vector<4x16xf32>
    %c0_24 = arith.constant 0 : index
    %c0_25 = arith.constant 0 : index
    %c0_26 = arith.constant 0 : index
    %55 = vector.load %arg5[%c0_24, %c0_25, %c0_26] : memref<1x4x16xf32, #tpu.memory_space<vmem>>, vector<1x4x16xf32>
    %56 = vector.shape_cast %55 : vector<1x4x16xf32> to vector<4x16xf32>
    %57 = vector.shape_cast %54 : vector<4x16xf32> to vector<1x4x16xf32>
    tpu.vector_store %arg5[%c0_24, %c0_25, %c0_26], %57 {strides = array<i32>} : memref<1x4x16xf32, #tpu.memory_space<vmem>>, vector<1x4x16xf32>,
    return
  }
  func.func @transform_0(%arg0: i32) -> (i32, i32, i32) {
    %c0_i32 = arith.constant 0 : i32
    %c0_i32_0 = arith.constant 0 : i32
    %c0_i32_1 = arith.constant 0 : i32
    return %arg0, %c0_i32, %c0_i32_0 : i32, i32, i32
  }
  func.func @transform_1(%arg0: i32) -> (i32, i32, i32) {
    %c0_i32 = arith.constant 0 : i32
    %c0_i32_0 = arith.constant 0 : i32
    %c0_i32_1 = arith.constant 0 : i32
    return %arg0, %c0_i32, %c0_i32_0 : i32, i32, i32
  }
  func.func @transform_2(%arg0: i32) -> (i32, i32) {
    %c0_i32 = arith.constant 0 : i32
    %c0_i32_0 = arith.constant 0 : i32
    %c0_i32_1 = arith.constant 0 : i32
    return %c0_i32, %c0_i32_0 : i32, i32
  }
  func.func @transform_3(%arg0: i32) -> (i32, i32) {
    %c0_i32 = arith.constant 0 : i32
    %c0_i32_0 = arith.constant 0 : i32
    %c0_i32_1 = arith.constant 0 : i32
    return %c0_i32, %c0_i32_0 : i32, i32
  }
  func.func @transform_4(%arg0: i32) -> (i32, i32, i32) {
    %c0_i32 = arith.constant 0 : i32
    %c0_i32_0 = arith.constant 0 : i32
    %c0_i32_1 = arith.constant 0 : i32
    return %arg0, %c0_i32, %c0_i32_0 : i32, i32, i32
  }
}

</mosaic_0001>

<llo_original>
// kernel: tpu_custom_call.1
$region0: #{tpu_custom_call.1}
  #allocation0 [shape = 'u32[]', space=smem, size = 0x4, offset = 0x4, fixed_abs, tag = 'smem constant byte address 0x4 - core index']
  #allocation1 [shape = 'u32[144,128]{1,0:T(1,128)}', space=vmem, size = 0x12000, scoped, tag = 'internal scratch']
  %s0 = inlined_call_operand.hbm [shape: bf16[2,16,128], index: 0, kind: input, shape index: {}]
  %s1 = inlined_call_operand.hbm [shape: bf16[2,16,128], index: 1, kind: input, shape index: {}]
  %s2 = inlined_call_operand.hbm [shape: f32[16,16], index: 2, kind: input, shape index: {}]
  %s3 = inlined_call_operand.hbm [shape: f32[16,16], index: 3, kind: input, shape index: {}]
  %s4 = inlined_call_operand.hbm [shape: f32[2,4,16], index: 4, kind: output, shape index: {}]
  %s5 = sld [smem:[#allocation0]]
  $region65: #{tpu_custom_call.1} parent=0
    _
  %s7 = ssub.s32 1, %s5
  %s8 = scalar_select 0, %s7, %s5
  $region1: #{tpu_custom_call.1} parent=0
    #allocation2 [shape = 'u8[8192]{0}', space=vmem, size = 0x2000, scoped, tag = 'input window, operand 0']
    #allocation3 [shape = 's32[2]{0}', space=sflag, size = 0x8, scoped, tag = 'scoped memory for tpu_custom_call.1']
    #allocation4 [shape = 's32[2]{0}', space=sflag, size = 0x8, scoped, tag = 'scoped memory for tpu_custom_call.1']
    #allocation5 [shape = 'u8[8192]{0}', space=vmem, size = 0x2000, scoped, tag = 'input window, operand 1']
    #allocation6 [shape = 's32[2]{0}', space=sflag, size = 0x8, scoped, tag = 'scoped memory for tpu_custom_call.1']
    #allocation7 [shape = 'u8[8192]{0}', space=vmem, size = 0x2000, scoped, tag = 'input window, operand 2, single buffered']
    #allocation8 [shape = 'u8[8192]{0}', space=vmem, size = 0x2000, scoped, tag = 'input window, operand 3, single buffered']
    #allocation9 [shape = 's32[1]{0}', space=sflag, size = 0x4, scoped, tag = 'scoped memory for tpu_custom_call.1']
    #allocation10 [shape = 'u8[4096]{0}', space=vmem, size = 0x1000, scoped, tag = 'output window, operand 0']
    %9 = vsyncpa [#allocation3], 0
    %s10 = scalar_lea.sflag [#allocation3], 1
    %11 = vsyncpa %s10, 0
    %12 = vsyncpa [#allocation6], 0
    %s13 = scalar_lea.sflag [#allocation6], 1
    %14 = vsyncpa %s13, 0
    %15 = vsyncpa [#allocation9], 0
    %16 = vsyncpa [#allocation4], 0
    %s17 = scalar_lea.sflag [#allocation4], 1
    %18 = vsyncpa %s17, 0
    loop: start=0, step=1, limit=4
    $region2: #{tpu_custom_call.1} parent=1 // loop_pre_header
      _
    $region3: #{tpu_custom_call.1} parent=1 // loop_header
      %s20 = sphi 0, %s24
      %p21 = scmp.ge.s32.totalorder %s20, 4
      %s30 = sphi 0, %s32
      %s33 = sphi 0, %s30
      %s34 = sphi 0, %s33
      %s50 = sphi 0, %s34
      %s56 = sphi 0, %s58
      %s59 = sphi 0, %s56
      %s60 = sphi 0, %s59
      %s76 = sphi 0, %s60
      %s80 = sphi 0, %s80
      %s82 = sphi 0, %s80
      %s83 = sphi 0, %s82
      %s97 = sphi 0, %s83
      %s101 = sphi 0, %s101
      %s103 = sphi 0, %s101
      %s104 = sphi 0, %s103
      %s118 = sphi 0, %s104
      %s124 = sphi 0, %s126
      %s127 = sphi 0, %s124
      %s128 = sphi 0, %s127
      %s144 = sphi 0, %s128
    $region4: #{tpu_custom_call.1} parent=1 // loop_header_branch
      %23 = sbr.rel (%p21) target = $region8
    $region5: #{tpu_custom_call.1} parent=1 // loop_body
      %s25 = ssub.s32 %s20, 1
      %s26 = ssub.s32 %s20, 2
      %s27 = sadd.s32 %s20, 1
      %s28 = ssub.s32 %s20, %s27
      %p29 = scmp.eq.s32.totalorder %s28, 0
      %s31 = sadd.s32 %s30, 1
      %s32 = scalar_select %p29, %s30, %s31
      %p35 = pneg %p29
      %p36 = scmp.eq.s32.totalorder %s20, 1
      %p37 = por %p35, %p36
      %p38 = scmp.ne.s32.totalorder %s30, %s33
      %p39 = scmp.eq.s32.totalorder %s20, 0
      %p40 = por %p38, %p39
      %p41 = scmp.ne.s32.totalorder %s30, %s33
      %p42 = scmp.eq.s32.totalorder %s25, 1
      %p43 = por %p41, %p42
      %p44 = scmp.ne.s32.totalorder %s33, %s34
      %p45 = scmp.eq.s32.totalorder %s25, 0
      %p46 = por %p44, %p45
      %p47 = scmp.ne.s32.totalorder %s33, %s34
      %p48 = scmp.eq.s32.totalorder %s26, 1
      %p49 = por %p47, %p48
      %p51 = scmp.ne.s32.totalorder %s34, %s50
      %p52 = scmp.eq.s32.totalorder %s26, 0
      %p53 = por %p51, %p52
      %s54 = ssub.s32 %s20, %s27
      %p55 = scmp.eq.s32.totalorder %s54, 0
      %s57 = sadd.s32 %s56, 1
      %s58 = scalar_select %p55, %s56, %s57
      %p61 = pneg %p55
      %p62 = scmp.eq.s32.totalorder %s20, 1
      %p63 = por %p61, %p62
      %p64 = scmp.ne.s32.totalorder %s56, %s59
      %p65 = scmp.eq.s32.totalorder %s20, 0
      %p66 = por %p64, %p65
      %p67 = scmp.ne.s32.totalorder %s56, %s59
      %p68 = scmp.eq.s32.totalorder %s25, 1
      %p69 = por %p67, %p68
      %p70 = scmp.ne.s32.totalorder %s59, %s60
      %p71 = scmp.eq.s32.totalorder %s25, 0
      %p72 = por %p70, %p71
      %p73 = scmp.ne.s32.totalorder %s59, %s60
      %p74 = scmp.eq.s32.totalorder %s26, 1
      %p75 = por %p73, %p74
      %p77 = scmp.ne.s32.totalorder %s60, %s76
      %p78 = scmp.eq.s32.totalorder %s26, 0
      %p79 = por %p77, %p78
      %s81 = sadd.s32 %s80, 1
      %p84 = scmp.eq.s32.totalorder %s20, 1
      %p85 = scmp.ne.s32.totalorder %s80, %s82
      %p86 = scmp.eq.s32.totalorder %s20, 0
      %p87 = por %p85, %p86
      %p88 = scmp.ne.s32.totalorder %s80, %s82
      %p89 = scmp.eq.s32.totalorder %s25, 1
      %p90 = por %p88, %p89
      %p91 = scmp.ne.s32.totalorder %s82, %s83
      %p92 = scmp.eq.s32.totalorder %s25, 0
      %p93 = por %p91, %p92
      %p94 = scmp.ne.s32.totalorder %s82, %s83
      %p95 = scmp.eq.s32.totalorder %s26, 1
      %p96 = por %p94, %p95
      %p98 = scmp.ne.s32.totalorder %s83, %s97
      %p99 = scmp.eq.s32.totalorder %s26, 0
      %p100 = por %p98, %p99
      %s102 = sadd.s32 %s101, 1
      %p105 = scmp.eq.s32.totalorder %s20, 1
      %p106 = scmp.ne.s32.totalorder %s101, %s103
      %p107 = scmp.eq.s32.totalorder %s20, 0
      %p108 = por %p106, %p107
      %p109 = scmp.ne.s32.totalorder %s101, %s103
      %p110 = scmp.eq.s32.totalorder %s25, 1
      %p111 = por %p109, %p110
      %p112 = scmp.ne.s32.totalorder %s103, %s104
      %p113 = scmp.eq.s32.totalorder %s25, 0
      %p114 = por %p112, %p113
      %p115 = scmp.ne.s32.totalorder %s103, %s104
      %p116 = scmp.eq.s32.totalorder %s26, 1
      %p117 = por %p115, %p116
      %p119 = scmp.ne.s32.totalorder %s104, %s118
      %p120 = scmp.eq.s32.totalorder %s26, 0
      %p121 = por %p119, %p120
      %s122 = ssub.s32 %s20, %s27
      %p123 = scmp.eq.s32.totalorder %s122, 0
      %s125 = sadd.s32 %s124, 1
      %s126 = scalar_select %p123, %s124, %s125
      %p129 = pneg %p123
      %p130 = scmp.eq.s32.totalorder %s20, 1
      %p131 = por %p129, %p130
      %p132 = scmp.ne.s32.totalorder %s124, %s127
      %p133 = scmp.eq.s32.totalorder %s20, 0
      %p134 = por %p132, %p133
      %p135 = scmp.ne.s32.totalorder %s124, %s127
      %p136 = scmp.eq.s32.totalorder %s25, 1
      %p137 = por %p135, %p136
      %p138 = scmp.ne.s32.totalorder %s127, %s128
      %p139 = scmp.eq.s32.totalorder %s25, 0
      %p140 = por %p138, %p139
      %p141 = scmp.ne.s32.totalorder %s127, %s128
      %p142 = scmp.eq.s32.totalorder %s26, 1
      %p143 = por %p141, %p142
      %p145 = scmp.ne.s32.totalorder %s128, %s144
      %p146 = scmp.eq.s32.totalorder %s26, 0
      %p147 = por %p145, %p146
      %p148 = scmp.le.s32.totalorder 1, %s20
      %p149 = scmp.lt.s32.totalorder %s20, 3
      %p150 = pnand %p148, %p149
      %p151 = pneg %p150
      // Predicated region
      $region9: #{tpu_custom_call.1} parent=5 // pred_check
        _
      $region10: #{tpu_custom_call.1} parent=5 // pred_check_branch
        %153 = sbr.rel (%p150) target = $region12
      $region11: #{tpu_custom_call.1} parent=5 // pred_region
        %s154 = ssub.s32 %s20, 1
        // Predicated region
        $region13: #{tpu_custom_call.1} parent=11 // pred_check
          %p155 = pneg %p93
        $region14: #{tpu_custom_call.1} parent=11 // pred_check_branch
          %157 = sbr.rel (%p155) target = $region16
        $region15: #{tpu_custom_call.1} parent=11 // pred_region
          %s159 = ssub.s32 256, 256
          %160 = vsyncadd [#allocation6], %s159
          %s161 = sshll.u32 [#allocation7], 4
          %s162 = int_to_ptr.vmem [resolvable:$true] %s161
          %167 = dma.hbm_to_vmem [thread:$0]  %s2, 256, %s162, [#allocation6], 128, 128, 8
        $region16: #{tpu_custom_call.1} parent=11 // pred_fallthru
          _
        // Predicated region
        $region17: #{tpu_custom_call.1} parent=11 // pred_check
          %p168 = pneg %p114
        $region18: #{tpu_custom_call.1} parent=11 // pred_check_branch
          %170 = sbr.rel (%p168) target = $region20
        $region19: #{tpu_custom_call.1} parent=11 // pred_region
          %s172 = ssub.s32 256, 256
          %173 = vsyncadd [#allocation9], %s172
          %s174 = sshll.u32 [#allocation8], 4
          %s175 = int_to_ptr.vmem [resolvable:$true] %s174
          %180 = dma.hbm_to_vmem [thread:$0]  %s3, 256, %s175, [#allocation9], 128, 128, 8
        $region20: #{tpu_custom_call.1} parent=11 // pred_fallthru
          _
      $region12: #{tpu_custom_call.1} parent=5 // pred_fallthru
        _
      %p181 = scmp.lt.s32.totalorder %s20, 2
      // Predicated region
      $region21: #{tpu_custom_call.1} parent=5 // pred_check
        %p182 = pneg %p181
      $region22: #{tpu_custom_call.1} parent=5 // pred_check_branch
        %184 = sbr.rel (%p182) target = $region24
      $region23: #{tpu_custom_call.1} parent=5 // pred_region
        // Predicated region
        $region25: #{tpu_custom_call.1} parent=23 // pred_check
          %p185 = pneg %p40
        $region26: #{tpu_custom_call.1} parent=23 // pred_check_branch
          %187 = sbr.rel (%p185) target = $region28
        $region27: #{tpu_custom_call.1} parent=23 // pred_region
          %s188 = sand.u32 %s30, 1
          %s189 = scalar_lea.sflag [#allocation3], %s188
          %s190 = sand.u32 %s30, 1
          %s191 = smul.addr %s190, 8
          %s192 = scalar_lea.vmem [#allocation2], %s191
          %s194 = ssub.s32 128, 128
          %195 = vsyncadd %s189, %s194
          %s196 = smul.addr %s20, 2
          %s197 = smul.addr %s196, 64
          %s198 = scalar_lea.hbm %s0, %s197
          %s199 = sshll.u32 %s192, 4
          %s200 = int_to_ptr.vmem [resolvable:$true] %s199
          %205 = dma.hbm_to_vmem [thread:$0]  %s198, 128, %s200, %s189, 64, 64, 4
        $region28: #{tpu_custom_call.1} parent=23 // pred_fallthru
          _
        // Predicated region
        $region29: #{tpu_custom_call.1} parent=23 // pred_check
          %p206 = pneg %p66
        $region30: #{tpu_custom_call.1} parent=23 // pred_check_branch
          %208 = sbr.rel (%p206) target = $region32
        $region31: #{tpu_custom_call.1} parent=23 // pred_region
          %s209 = sand.u32 %s20, 1
          %s210 = scalar_lea.sflag [#allocation6], %s209
          %s211 = sand.u32 %s56, 1
          %s212 = smul.addr %s211, 8
          %s213 = scalar_lea.vmem [#allocation5], %s212
          %s215 = ssub.s32 128, 128
          %216 = vsyncadd %s210, %s215
          %s217 = smul.addr %s20, 2
          %s218 = smul.addr %s217, 64
          %s219 = scalar_lea.hbm %s1, %s218
          %s220 = sshll.u32 %s213, 4
          %s221 = int_to_ptr.vmem [resolvable:$true] %s220
          %226 = dma.hbm_to_vmem [thread:$0]  %s219, 128, %s221, %s210, 64, 64, 4
        $region32: #{tpu_custom_call.1} parent=23 // pred_fallthru
          _
      $region24: #{tpu_custom_call.1} parent=5 // pred_fallthru
        _
      %p227 = scmp.le.s32.totalorder 1, %s20
      %p228 = scmp.lt.s32.totalorder %s20, 3
      %p229 = pnand %p227, %p228
      %p230 = pneg %p229
      // Predicated region
      $region33: #{tpu_custom_call.1} parent=5 // pred_check
        _
      $region34: #{tpu_custom_call.1} parent=5 // pred_check_branch
        %232 = sbr.rel (%p229) target = $region36
      $region35: #{tpu_custom_call.1} parent=5 // pred_region
        %s233 = ssub.s32 %s20, 1
        %s234 = sand.u32 %s33, 1
        %s235 = scalar_lea.sflag [#allocation3], %s234
        %s236 = sand.u32 %s33, 1
        %s237 = smul.addr %s236, 8
        %s238 = scalar_lea.vmem [#allocation2], %s237
        // Predicated region
        $region37: #{tpu_custom_call.1} parent=35 // pred_check
          %p239 = pneg %p46
        $region38: #{tpu_custom_call.1} parent=35 // pred_check_branch
          %241 = sbr.rel (%p239) target = $region40
        $region39: #{tpu_custom_call.1} parent=35 // pred_region
          %242 = dma.done %s235, 128
        $region40: #{tpu_custom_call.1} parent=35 // pred_fallthru
          _
        %s243 = sand.u32 %s25, 1
        %s244 = scalar_lea.sflag [#allocation6], %s243
        %s245 = sand.u32 %s59, 1
        %s246 = smul.addr %s245, 8
        %s247 = scalar_lea.vmem [#allocation5], %s246
        // Predicated region
        $region41: #{tpu_custom_call.1} parent=35 // pred_check
          %p248 = pneg %p72
        $region42: #{tpu_custom_call.1} parent=35 // pred_check_branch
          %250 = sbr.rel (%p248) target = $region44
        $region43: #{tpu_custom_call.1} parent=35 // pred_region
          %251 = dma.done %s244, 128
        $region44: #{tpu_custom_call.1} parent=35 // pred_fallthru
          _
        // Predicated region
        $region45: #{tpu_custom_call.1} parent=35 // pred_check
          %p252 = pneg %p93
        $region46: #{tpu_custom_call.1} parent=35 // pred_check_branch
          %254 = sbr.rel (%p252) target = $region48
        $region47: #{tpu_custom_call.1} parent=35 // pred_region
          %255 = dma.done [#allocation6], 256
        $region48: #{tpu_custom_call.1} parent=35 // pred_fallthru
          _
        // Predicated region
        $region49: #{tpu_custom_call.1} parent=35 // pred_check
          %p256 = pneg %p114
        $region50: #{tpu_custom_call.1} parent=35 // pred_check_branch
          %258 = sbr.rel (%p256) target = $region52
        $region51: #{tpu_custom_call.1} parent=35 // pred_region
          %259 = dma.done [#allocation9], 256
        $region52: #{tpu_custom_call.1} parent=35 // pred_fallthru
          _
        %s260 = sand.u32 %s33, 1
        %s261 = scalar_lea.sflag [#allocation3], %s260
        %s262 = sand.u32 %s33, 1
        %s263 = smul.addr %s262, 8
        %s264 = scalar_lea.vmem [#allocation2], %s263
        %p265 = pneg %p46
        %p266 = pneg %p43
        %s267 = sand.u32 %s25, 1
        %s268 = scalar_lea.sflag [#allocation6], %s267
        %s269 = sand.u32 %s59, 1
        %s270 = smul.addr %s269, 8
        %s271 = scalar_lea.vmem [#allocation5], %s270
        %p272 = pneg %p72
        %p273 = pneg %p69
        %p274 = pneg %p93
        %p275 = pneg %p90
        %p276 = pneg %p114
        %p277 = pneg %p111
        %p278 = pneg %p140
        %p279 = pneg %p137
        %s280 = sand.u32 %s127, 1
        %s281 = scalar_lea.sflag [#allocation4], %s280
        %s282 = sand.u32 %s127, 1
        %s283 = smul.addr %s282, 4
        %s284 = scalar_lea.vmem [#allocation10], %s283
        %v286 = vld [vmem:[%s238] sm:$0xf]
        %v287 = vld [vmem:[%s238 + $0x4] sm:$0xf]
        %v288 = vld [vmem:[%s247] sm:$0xf]
        %v289 = vld [vmem:[%s247 + $0x4] sm:$0xf]
        %v290 = vld [vmem:[#allocation7] sm:$0xff]
        %v291 = vld [vmem:[#allocation7 + $0x8] sm:$0xff]
        %v292 = vld [vmem:[#allocation8] sm:$0xff]
        %v293 = vld [vmem:[#allocation8 + $0x8] sm:$0xff]
        %v296 = vunpack.c.l.b16 %v288
        %v297 = vunpack.c.l.b16 %v289
        %v298 = vpack.c.b16 %v297, %v296
        %v301 = vunpack.c.l.b16 %v286
        %v302 = vunpack.c.l.b16 %v287
        %v303 = vpack.c.b16 %v302, %v301
        %vm304 = vcmask 261120
        %v306 = vsel %vm304, %v298, 0
        %v309 = vsel %vm304, %v303, 0
        %311 = vmatprep.subr.bf16.mxu0 0
        %312 = vmatpush1.bf16.xpose.msra.mxu0 %v309
        %313 = vmatprep.subr.bf16.mxu0 0
        %314 = vmatpush1.bf16.xpose.msra.mxu0 0
        %315 = vmatprep.subr.bf16.mxu0 0
        %316 = vmatpush1.bf16.xpose.msra.mxu0 0
        %317 = vmatprep.subr.bf16.mxu0 0
        %318 = vmatpush1.bf16.xpose.msra.mxu0 0
        %319 = vmatprep.subr.bf16.mxu0 0
        %320 = vmatpush1.bf16.xpose.msra.mxu0 0
        %321 = vmatprep.subr.bf16.mxu0 0
        %322 = vmatpush1.bf16.xpose.msra.mxu0 0
        %323 = vmatprep.subr.bf16.mxu0 0
        %324 = vmatpush1.bf16.xpose.msra.mxu0 0
        %325 = vmatprep.subr.bf16.mxu0 0
        %326 = vmatpush1.bf16.xpose.msra.mxu0 0
        %327 = vmatprep.subr.bf16.mxu0 0
        %328 = vmatpush1.bf16.xpose.msra.mxu0 0
        %329 = vmatprep.subr.bf16.mxu0 0
        %330 = vmatpush1.bf16.xpose.msra.mxu0 0
        %331 = vmatprep.subr.bf16.mxu0 0
        %332 = vmatpush1.bf16.xpose.msra.mxu0 0
        %333 = vmatprep.subr.bf16.mxu0 0
        %334 = vmatpush1.bf16.xpose.msra.mxu0 0
        %335 = vmatprep.subr.bf16.mxu0 0
        %336 = vmatpush1.bf16.xpose.msra.mxu0 0
        %337 = vmatprep.subr.bf16.mxu0 0
        %338 = vmatpush1.bf16.xpose.msra.mxu0 0
        %339 = vmatprep.subr.bf16.mxu0 0
        %340 = vmatpush1.bf16.xpose.msra.mxu0 0
        %341 = vmatprep.subr.bf16.mxu0 0
        %342 = vmatpush1.bf16.xpose.msra.mxu0 0
        %343 = vmatprep.mubr.bf16.mxu0 0
        %344 = vmatmul.mubr.bf16.gmra.mrb[0].mxu0 %v306
        %v345 = vpop.f32.mrb[0].mxu0
        %v346 = vadd.f32 0.0, %v345
        %v347 = vpop.f32.mrb[0].mxu0
        %v348 = vpop.f32.mrb[0].mxu0
        %v349 = vadd.f32 0.0, %v348
        %v350 = vpop.f32.mrb[0].mxu0
        %351 = vdwg.mxu0
        %v352 = vadd.f32 %v346, %v292
        %v353 = vadd.f32 %v349, %v293
        %vm354 = vcmask 130048
        %v355 = vsel %vm354, %v352, -inf
        %v356 = vsel %vm354, %v353, -inf
        %v357 = vmax.f32 %v355, %v356
        %v358 = vrot.slane %v357, 4
        %v359 = vmax.f32 %v357, %v358
        %v360 = vrot.slane %v359, 2
        %v361 = vmax.f32 %v359, %v360
        %v362 = vrot.slane %v361, 1
        %v363 = vmax.f32 %v361, %v362
        %v364 = vmul.f32 %v346, %v290
        %v365 = vmul.f32 %v349, %v291
        %v366 = vsel %vm354, %v364, 0.0
        %v367 = vsel %vm354, %v365, 0.0
        %v368 = vadd.f32 %v366, %v367
        %v369 = vrot.slane %v368, 4
        %v370 = vadd.f32 %v368, %v369
        %v371 = vrot.slane %v370, 2
        %v372 = vadd.f32 %v370, %v371
        %v373 = vrot.slane %v372, 1
        %v374 = vadd.f32 %v372, %v373
        %v375 = vmul.f32 %v374, 0.0625
        %v376 = vsub.f32 %v363, %v375
        %377 = vrot.lane.b32.xlu0 %v298, 96
        %v378 = vpop.permute.xlu0 %377
        %379 = vrot.lane.b32.xlu0 %v303, 96
        %v380 = vpop.permute.xlu0 %379
        %v382 = vsel %vm304, %v378, 0
        %v385 = vsel %vm304, %v380, 0
        %387 = vmatprep.subr.bf16.mxu0 0
        %388 = vmatpush1.bf16.xpose.msra.mxu0 %v385
        %389 = vmatprep.subr.bf16.mxu0 0
        %390 = vmatpush1.bf16.xpose.msra.mxu0 0
        %391 = vmatprep.subr.bf16.mxu0 0
        %392 = vmatpush1.bf16.xpose.msra.mxu0 0
        %393 = vmatprep.subr.bf16.mxu0 0
        %394 = vmatpush1.bf16.xpose.msra.mxu0 0
        %395 = vmatprep.subr.bf16.mxu0 0
        %396 = vmatpush1.bf16.xpose.msra.mxu0 0
        %397 = vmatprep.subr.bf16.mxu0 0
        %398 = vmatpush1.bf16.xpose.msra.mxu0 0
        %399 = vmatprep.subr.bf16.mxu0 0
        %400 = vmatpush1.bf16.xpose.msra.mxu0 0
        %401 = vmatprep.subr.bf16.mxu0 0
        %402 = vmatpush1.bf16.xpose.msra.mxu0 0
        %403 = vmatprep.subr.bf16.mxu0 0
        %404 = vmatpush1.bf16.xpose.msra.mxu0 0
        %405 = vmatprep.subr.bf16.mxu0 0
        %406 = vmatpush1.bf16.xpose.msra.mxu0 0
        %407 = vmatprep.subr.bf16.mxu0 0
        %408 = vmatpush1.bf16.xpose.msra.mxu0 0
        %409 = vmatprep.subr.bf16.mxu0 0
        %410 = vmatpush1.bf16.xpose.msra.mxu0 0
        %411 = vmatprep.subr.bf16.mxu0 0
        %412 = vmatpush1.bf16.xpose.msra.mxu0 0
        %413 = vmatprep.subr.bf16.mxu0 0
        %414 = vmatpush1.bf16.xpose.msra.mxu0 0
        %415 = vmatprep.subr.bf16.mxu0 0
        %416 = vmatpush1.bf16.xpose.msra.mxu0 0
        %417 = vmatprep.subr.bf16.mxu0 0
        %418 = vmatpush1.bf16.xpose.msra.mxu0 0
        %419 = vmatprep.mubr.bf16.mxu0 0
        %420 = vmatmul.mubr.bf16.gmra.mrb[0].mxu0 %v382
        %v421 = vpop.f32.mrb[0].mxu0
        %v422 = vadd.f32 0.0, %v421
        %v423 = vpop.f32.mrb[0].mxu0
        %v424 = vpop.f32.mrb[0].mxu0
        %v425 = vadd.f32 0.0, %v424
        %v426 = vpop.f32.mrb[0].mxu0
        %427 = vdwg.mxu0
        %v428 = vadd.f32 %v422, %v292
        %v429 = vadd.f32 %v425, %v293
        %v430 = vsel %vm354, %v428, -inf
        %v431 = vsel %vm354, %v429, -inf
        %v432 = vmax.f32 %v430, %v431
        %v433 = vrot.slane %v432, 4
        %v434 = vmax.f32 %v432, %v433
        %v435 = vrot.slane %v434, 2
        %v436 = vmax.f32 %v434, %v435
        %v437 = vrot.slane %v436, 1
        %v438 = vmax.f32 %v436, %v437
        %v439 = vmul.f32 %v422, %v290
        %v440 = vmul.f32 %v425, %v291
        %v441 = vsel %vm354, %v439, 0.0
        %v442 = vsel %vm354, %v440, 0.0
        %v443 = vadd.f32 %v441, %v442
        %v444 = vrot.slane %v443, 4
        %v445 = vadd.f32 %v443, %v444
        %v446 = vrot.slane %v445, 2
        %v447 = vadd.f32 %v445, %v446
        %v448 = vrot.slane %v447, 1
        %v449 = vadd.f32 %v447, %v448
        %v450 = vmul.f32 %v449, 0.0625
        %v451 = vsub.f32 %v438, %v450
        %452 = vrot.lane.b32.xlu0 %v298, 64
        %v453 = vpop.permute.xlu0 %452
        %454 = vrot.lane.b32.xlu0 %v303, 64
        %v455 = vpop.permute.xlu0 %454
        %v457 = vsel %vm304, %v453, 0
        %v460 = vsel %vm304, %v455, 0
        %462 = vmatprep.subr.bf16.mxu0 0
        %463 = vmatpush1.bf16.xpose.msra.mxu0 %v460
        %464 = vmatprep.subr.bf16.mxu0 0
        %465 = vmatpush1.bf16.xpose.msra.mxu0 0
        %466 = vmatprep.subr.bf16.mxu0 0
        %467 = vmatpush1.bf16.xpose.msra.mxu0 0
        %468 = vmatprep.subr.bf16.mxu0 0
        %469 = vmatpush1.bf16.xpose.msra.mxu0 0
        %470 = vmatprep.subr.bf16.mxu0 0
        %471 = vmatpush1.bf16.xpose.msra.mxu0 0
        %472 = vmatprep.subr.bf16.mxu0 0
        %473 = vmatpush1.bf16.xpose.msra.mxu0 0
        %474 = vmatprep.subr.bf16.mxu0 0
        %475 = vmatpush1.bf16.xpose.msra.mxu0 0
        %476 = vmatprep.subr.bf16.mxu0 0
        %477 = vmatpush1.bf16.xpose.msra.mxu0 0
        %478 = vmatprep.subr.bf16.mxu0 0
        %479 = vmatpush1.bf16.xpose.msra.mxu0 0
        %480 = vmatprep.subr.bf16.mxu0 0
        %481 = vmatpush1.bf16.xpose.msra.mxu0 0
        %482 = vmatprep.subr.bf16.mxu0 0
        %483 = vmatpush1.bf16.xpose.msra.mxu0 0
        %484 = vmatprep.subr.bf16.mxu0 0
        %485 = vmatpush1.bf16.xpose.msra.mxu0 0
        %486 = vmatprep.subr.bf16.mxu0 0
        %487 = vmatpush1.bf16.xpose.msra.mxu0 0
        %488 = vmatprep.subr.bf16.mxu0 0
        %489 = vmatpush1.bf16.xpose.msra.mxu0 0
        %490 = vmatprep.subr.bf16.mxu0 0
        %491 = vmatpush1.bf16.xpose.msra.mxu0 0
        %492 = vmatprep.subr.bf16.mxu0 0
        %493 = vmatpush1.bf16.xpose.msra.mxu0 0
        %494 = vmatprep.mubr.bf16.mxu0 0
        %495 = vmatmul.mubr.bf16.gmra.mrb[0].mxu0 %v457
        %v496 = vpop.f32.mrb[0].mxu0
        %v497 = vadd.f32 0.0, %v496
        %v498 = vpop.f32.mrb[0].mxu0
        %v499 = vpop.f32.mrb[0].mxu0
        %v500 = vadd.f32 0.0, %v499
        %v501 = vpop.f32.mrb[0].mxu0
        %502 = vdwg.mxu0
        %v503 = vadd.f32 %v497, %v292
        %v504 = vadd.f32 %v500, %v293
        %v505 = vsel %vm354, %v503, -inf
        %v506 = vsel %vm354, %v504, -inf
        %v507 = vmax.f32 %v505, %v506
        %v508 = vrot.slane %v507, 4
        %v509 = vmax.f32 %v507, %v508
        %v510 = vrot.slane %v509, 2
        %v511 = vmax.f32 %v509, %v510
        %v512 = vrot.slane %v511, 1
        %v513 = vmax.f32 %v511, %v512
        %v514 = vmul.f32 %v497, %v290
        %v515 = vmul.f32 %v500, %v291
        %v516 = vsel %vm354, %v514, 0.0
        %v517 = vsel %vm354, %v515, 0.0
        %v518 = vadd.f32 %v516, %v517
        %v519 = vrot.slane %v518, 4
        %v520 = vadd.f32 %v518, %v519
        %v521 = vrot.slane %v520, 2
        %v522 = vadd.f32 %v520, %v521
        %v523 = vrot.slane %v522, 1
        %v524 = vadd.f32 %v522, %v523
        %v525 = vmul.f32 %v524, 0.0625
        %v526 = vsub.f32 %v513, %v525
        %527 = vrot.lane.b32.xlu0 %v298, 32
        %v528 = vpop.permute.xlu0 %527
        %529 = vrot.lane.b32.xlu0 %v303, 32
        %v530 = vpop.permute.xlu0 %529
        %v532 = vsel %vm304, %v528, 0
        %v535 = vsel %vm304, %v530, 0
        %537 = vmatprep.subr.bf16.mxu0 0
        %538 = vmatpush1.bf16.xpose.msra.mxu0 %v535
        %539 = vmatprep.subr.bf16.mxu0 0
        %540 = vmatpush1.bf16.xpose.msra.mxu0 0
        %541 = vmatprep.subr.bf16.mxu0 0
        %542 = vmatpush1.bf16.xpose.msra.mxu0 0
        %543 = vmatprep.subr.bf16.mxu0 0
        %544 = vmatpush1.bf16.xpose.msra.mxu0 0
        %545 = vmatprep.subr.bf16.mxu0 0
        %546 = vmatpush1.bf16.xpose.msra.mxu0 0
        %547 = vmatprep.subr.bf16.mxu0 0
        %548 = vmatpush1.bf16.xpose.msra.mxu0 0
        %549 = vmatprep.subr.bf16.mxu0 0
        %550 = vmatpush1.bf16.xpose.msra.mxu0 0
        %551 = vmatprep.subr.bf16.mxu0 0
        %552 = vmatpush1.bf16.xpose.msra.mxu0 0
        %553 = vmatprep.subr.bf16.mxu0 0
        %554 = vmatpush1.bf16.xpose.msra.mxu0 0
        %555 = vmatprep.subr.bf16.mxu0 0
        %556 = vmatpush1.bf16.xpose.msra.mxu0 0
        %557 = vmatprep.subr.bf16.mxu0 0
        %558 = vmatpush1.bf16.xpose.msra.mxu0 0
        %559 = vmatprep.subr.bf16.mxu0 0
        %560 = vmatpush1.bf16.xpose.msra.mxu0 0
        %561 = vmatprep.subr.bf16.mxu0 0
        %562 = vmatpush1.bf16.xpose.msra.mxu0 0
        %563 = vmatprep.subr.bf16.mxu0 0
        %564 = vmatpush1.bf16.xpose.msra.mxu0 0
        %565 = vmatprep.subr.bf16.mxu0 0
        %566 = vmatpush1.bf16.xpose.msra.mxu0 0
        %567 = vmatprep.subr.bf16.mxu0 0
        %568 = vmatpush1.bf16.xpose.msra.mxu0 0
        %569 = vmatprep.mubr.bf16.mxu0 0
        %570 = vmatmul.mubr.bf16.gmra.mrb[0].mxu0 %v532
        %v571 = vpop.f32.mrb[0].mxu0
        %v572 = vadd.f32 0.0, %v571
        %v573 = vpop.f32.mrb[0].mxu0
        %v574 = vpop.f32.mrb[0].mxu0
        %v575 = vadd.f32 0.0, %v574
        %v576 = vpop.f32.mrb[0].mxu0
        %577 = vdwg.mxu0
        %v578 = vadd.f32 %v572, %v292
        %v579 = vadd.f32 %v575, %v293
        %v580 = vsel %vm354, %v578, -inf
        %v581 = vsel %vm354, %v579, -inf
        %v582 = vmax.f32 %v580, %v581
        %v583 = vrot.slane %v582, 4
        %v584 = vmax.f32 %v582, %v583
        %v585 = vrot.slane %v584, 2
        %v586 = vmax.f32 %v584, %v585
        %v587 = vrot.slane %v586, 1
        %v588 = vmax.f32 %v586, %v587
        %v589 = vmul.f32 %v572, %v290
        %v590 = vmul.f32 %v575, %v291
        %v591 = vsel %vm354, %v589, 0.0
        %v592 = vsel %vm354, %v590, 0.0
        %v593 = vadd.f32 %v591, %v592
        %v594 = vrot.slane %v593, 4
        %v595 = vadd.f32 %v593, %v594
        %v596 = vrot.slane %v595, 2
        %v597 = vadd.f32 %v595, %v596
        %v598 = vrot.slane %v597, 1
        %v599 = vadd.f32 %v597, %v598
        %v600 = vmul.f32 %v599, 0.0625
        %v601 = vsub.f32 %v588, %v600
        %vm602 = vcmask 1040384
        %v603 = vsel %vm602, %v376, %v451
        %vm604 = vcmask 1041408
        %v605 = vsel %vm604, %v603, %v526
        %vm606 = vcmask 1042432
        %v607 = vsel %vm606, %v605, %v601
        %vm608 = vcmask 125952
        %609 = vst.msk [vmem:[%s284] sm:$0xf] %vm608, %v607
        %s610 = sand.u32 %s127, 1
        %s611 = scalar_lea.sflag [#allocation4], %s610
        %s612 = sand.u32 %s127, 1
        %s613 = smul.addr %s612, 4
        %s614 = scalar_lea.vmem [#allocation10], %s613
        // Predicated region
        $region53: #{tpu_custom_call.1} parent=35 // pred_check
          %p615 = pneg %p137
        $region54: #{tpu_custom_call.1} parent=35 // pred_check_branch
          %617 = sbr.rel (%p615) target = $region56
        $region55: #{tpu_custom_call.1} parent=35 // pred_region
          %s619 = ssub.s32 64, 64
          %620 = vsyncadd %s611, %s619
          %s621 = smul.addr %s25, 64
          %s622 = scalar_lea.hbm %s4, %s621
          %s624 = sshll.u32 %s614, 4
          %s625 = int_to_ptr.vmem [resolvable:$true] %s624
          %627 = dma.vmem_to_hbm [thread:$0]  %s625, 64, %s622, %s611
        $region56: #{tpu_custom_call.1} parent=35 // pred_fallthru
          _
      $region36: #{tpu_custom_call.1} parent=5 // pred_fallthru
        _
      %p628 = scmp.le.s32.totalorder 2, %s20
      // Predicated region
      $region57: #{tpu_custom_call.1} parent=5 // pred_check
        %p629 = pneg %p628
      $region58: #{tpu_custom_call.1} parent=5 // pred_check_branch
        %631 = sbr.rel (%p629) target = $region60
      $region59: #{tpu_custom_call.1} parent=5 // pred_region
        %s632 = ssub.s32 %s20, 2
        // Predicated region
        $region61: #{tpu_custom_call.1} parent=59 // pred_check
          %p633 = pneg %p143
        $region62: #{tpu_custom_call.1} parent=59 // pred_check_branch
          %635 = sbr.rel (%p633) target = $region64
        $region63: #{tpu_custom_call.1} parent=59 // pred_region
          %s636 = sand.u32 %s128, 1
          %s637 = scalar_lea.sflag [#allocation4], %s636
          %s638 = sand.u32 %s128, 1
          %s639 = smul.addr %s638, 4
          %s640 = scalar_lea.vmem [#allocation10], %s639
          %641 = dma.done %s637, 64
        $region64: #{tpu_custom_call.1} parent=59 // pred_fallthru
          _
      $region60: #{tpu_custom_call.1} parent=5 // pred_fallthru
        _
    $region6: #{tpu_custom_call.1} parent=1 // loop_footer
      %s24 = sadd.s32 1, %s20
    $region7: #{tpu_custom_call.1} parent=1 // loop_footer_branch
      %19 = sbr.rel target = $region3
    $region8: #{tpu_custom_call.1} parent=1 // loop_exit
      _
    %642 = vsyncpa [#allocation3], 1
    %s643 = scalar_lea.sflag [#allocation3], 1
    %644 = vsyncpa %s643, 1
    %645 = vsyncpa [#allocation6], 1
    %s646 = scalar_lea.sflag [#allocation6], 1
    %647 = vsyncpa %s646, 1
    %648 = vsyncpa [#allocation9], 1
    %649 = vsyncpa [#allocation4], 1
    %s650 = scalar_lea.sflag [#allocation4], 1
    %651 = vsyncpa %s650, 1

</llo_original>
